<compile_context>
chip_gen: v5e
topology: v5e:2x2
jax: 0.10.0
libtpu: 0.0.40
codegen_flags: <defaults>
</compile_context>

<pallas_src>
import functools

import jax
import jax.numpy as jnp
from jax.experimental import pallas as pl
from jax.experimental.pallas import tpu as pltpu


def _tpu_vmem_and_cores():
    """Returns (VMEM bytes per TensorCore, TensorCores per chip), with fallback."""
    try:
        vmem_cap = int(pltpu.get_tpu_info().vmem_capacity_bytes)
    except Exception:  # non-TPU tracing / older jax: assume v5e/v6e-class
        vmem_cap = 128 << 20
    # Heuristic: only v7x-class chips have 64 MiB VMEM/TC and 2 TCs per chip;
    # v5e/v6e have 128 MiB VMEM and a single TensorCore.
    num_tc = 2 if vmem_cap <= (64 << 20) else 1
    return vmem_cap, num_tc


def _colornorm_kernel(x_ref, g_ref, b_ref, o_ref, *, eps, hw):
    # x_ref/o_ref: (row_tile, hw); g_ref/b_ref: (row_tile, 1), streamed per step.
    # Boundary blocks may contain garbage rows past `rows`; all reductions are
    # strictly per-row (axis=1) and those rows are never written back, so this
    # is safe. Keep that invariant if restructuring.
    x = x_ref[...].astype(jnp.float32)

    # Single pass over the tile: per-row sum and sum of squares.
    s1 = jnp.sum(x, axis=1, keepdims=True)            # (row_tile, 1)
    s2 = jnp.sum(x * x, axis=1, keepdims=True)        # (row_tile, 1)
    mean = s1 * jnp.float32(1.0 / hw)

    # Unbiased (ddof=1) variance, matching torch.std. hw == 1 -> 0 * inf = NaN,
    # exactly like torch.std of a single element.
    inv_nm1 = jnp.float32(1.0 / (hw - 1)) if hw > 1 else jnp.float32(jnp.inf)
    var = jnp.maximum(s2 - mean * s1, 0.0) * inv_nm1  # clamp f32 cancellation
    std = jnp.sqrt(var)

    g = g_ref[...].astype(jnp.float32)                # (row_tile, 1)
    b = b_ref[...].astype(jnp.float32)

    # Fold gamma and mean into a per-row scale/shift: the only full-tile work
    # after the reductions is a single broadcast FMA. The divide is
    # O(row_tile) and off the HBM-bound critical path, so keep it exact.
    scale = g / (std + jnp.float32(eps))
    shift = b - mean * scale
    o_ref[...] = (x * scale + shift).astype(o_ref.dtype)


def _plan_tiling(rows, hw, in_dtype, *, vmem_cap, num_tc):
    """Pick (row_tile, num_blocks, vmem_limit_bytes) for the 1-D row grid."""
    in_bytes = jnp.dtype(in_dtype).itemsize
    # Dtype-aware sublane granularity (packed-vreg layout for sub-32-bit).
    sub = {4: 8, 2: 16, 1: 32}.get(in_bytes, 8)
    # VMEM holds lane-padded rows when hw % 128 != 0 (masked stores too).
    hw_lanes = -(-hw // 128) * 128
    # Per-row footprint: double-buffered input + output blocks + one f32
    # working copy, with ~25% headroom for Mosaic internal scratch / temps.
    per_row = int(hw_lanes * (2 * in_bytes + 2 * in_bytes + 4) * 1.25)
    # Generation-aware block budget: smaller on v7x (64 MiB VMEM/TC); block
    # size returns are flat beyond a few MiB per buffer anyway.
    block_budget = (12 << 20) if vmem_cap <= (64 << 20) else (24 << 20)

    max_rows_by_vmem = max(sub, block_budget // max(per_row, 1))
    # Single-TC chips (v5e/v6e) only need ~2 steps for pipeline ramp; v7x
    # wants a few (even) steps so both TensorCores get balanced work.
    min_steps = 4 if num_tc > 1 else 2
    target = min(max_rows_by_vmem, max(sub, -(-rows // min_steps)))
    row_tile = max(sub, (target // sub) * sub)
    # Never exceed rows rounded up to the sublane granularity.
    row_tile = min(row_tile, -(-rows // sub) * sub)

    num_blocks = -(-rows // row_tile)
    if num_tc > 1 and num_blocks > 1 and num_blocks % 2:
        # Round the 1-D "parallel" grid to an even step count so the two
        # TensorCores get balanced halves.
        bumped_rows = -(-rows // (num_blocks + 1))
        row_tile = max(sub, -(-bumped_rows // sub) * sub)
        num_blocks = -(-rows // row_tile)

    # Explicit VMEM limit with headroom below physical capacity
    # (v5e scoped default is only 16 MiB; v7x physical is only 64 MiB).
    vmem_limit = int(min(48 << 20, (vmem_cap * 7) // 10))

    step_bytes = per_row * row_tile
    if step_bytes > vmem_limit:
        # TODO(synk): add an inner 'arbitrary' grid axis over hw chunks with
        # (sum, sumsq) scratch accumulators + a second normalize pass for
        # spatial sizes whose single-row block exceeds the VMEM budget.
        raise NotImplementedError(
            f"H*W={hw} too large for a single VMEM block "
            f"(~{step_bytes >> 20} MiB needed, limit {vmem_limit >> 20} MiB)")
    return row_tile, num_blocks, vmem_limit


def colornorm(x, gamma, beta, eps=1e-5, row_tile=None):
    """ColorNorm forward. x: (N, C, H, W); gamma, beta: (C,). Same shape/dtype out."""
    N, C, H, W = x.shape
    assert gamma.shape == (C,) and beta.shape == (C,)
    rows = N * C
    hw = H * W

    vmem_cap, num_tc = _tpu_vmem_and_cores()
    if row_tile is None:
        row_tile, num_blocks, vmem_limit = _plan_tiling(
            rows, hw, x.dtype, vmem_cap=vmem_cap, num_tc=num_tc)
    else:
        num_blocks = pl.cdiv(rows, row_tile)
        vmem_limit = int(min(48 << 20, (vmem_cap * 7) // 10))

    # (rows, hw) view of x — a reshape, no HBM copy / no padding of x.
    x2 = x.reshape(rows, hw)

    # Tiny per-row affine params (rows, 1), streamed per grid step (a resident
    # (rows, 1) block would waste 127/128 lanes of (8,128) tile padding).
    g_rows = jnp.tile(gamma, N).reshape(rows, 1)
    b_rows = jnp.tile(beta, N).reshape(rows, 1)

    x_bytes = jnp.dtype(x.dtype).itemsize
    p_bytes = jnp.dtype(g_rows.dtype).itemsize
    cost = pl.CostEstimate(
        flops=7 * rows * hw,                 # x*x, two sums, one FMA, stats
        transcendentals=rows,                # one sqrt per (batch, channel) row
        bytes_accessed=2 * rows * hw * x_bytes + 2 * rows * p_bytes,
    )

    out = pl.pallas_call(
        functools.partial(_colornorm_kernel, eps=eps, hw=hw),
        out_shape=jax.ShapeDtypeStruct((rows, hw), x.dtype),
        grid_spec=pltpu.PrefetchScalarGridSpec(
            num_scalar_prefetch=0,
            grid=(num_blocks,),
            in_specs=[
                pl.BlockSpec((row_tile, hw), lambda i: (i, 0)),
                pl.BlockSpec((row_tile, 1), lambda i: (i, 0)),
                pl.BlockSpec((row_tile, 1), lambda i: (i, 0)),
            ],
            out_specs=pl.BlockSpec((row_tile, hw), lambda i: (i, 0)),
        ),
        compiler_params=pltpu.CompilerParams(
            dimension_semantics=("parallel",),
            vmem_limit_bytes=vmem_limit,
        ),
        cost_estimate=cost,
    )(x2, g_rows, b_rows)

    return out.reshape(N, C, H, W)


def colornorm_ref(x, gamma, beta, eps=1e-5):
    """Pure-JAX reference mirroring the PyTorch forward (two-pass std, ddof=1)."""
    N, C = x.shape[0], x.shape[1]
    xf = x.reshape(N, C, -1).astype(jnp.float32)
    mean = xf.mean(axis=2).reshape(N, C, 1, 1)
    std = jnp.sqrt(
        jnp.sum((xf - xf.mean(axis=2, keepdims=True)) ** 2, axis=2)
        / (xf.shape[2] - 1)
    ).reshape(N, C, 1, 1)
    y = (x.astype(jnp.float32) - mean) / (std + eps)
    y = gamma.reshape(1, -1, 1, 1) * y + beta.reshape(1, -1, 1, 1)
    return y.astype(x.dtype)


if __name__ == "__main__":
    key = jax.random.PRNGKey(0)
    N, C, H, W = 2, 4, 16, 16

    x = jax.random.normal(key, (N, C, H, W), dtype=jnp.float32)
    # Deterministic parameter init, matching nn.Parameter(ones/zeros(features)).
    gamma = jnp.ones((C,), dtype=jnp.float32)
    beta = jnp.zeros((C,), dtype=jnp.float32)

    out = colornorm(x, gamma, beta)
    out = jax.block_until_ready(out)

    ref = colornorm_ref(x, gamma, beta)
    assert out.shape == (N, C, H, W)
    # Tolerance covers the f32 single-pass (sum/sumsq) stats vs the two-pass ref.
    assert jnp.allclose(out, ref, atol=1e-4, rtol=1e-4), "mismatch vs reference"

    print("KERNEL_OK")
</pallas_src>

<mosaic_0001>
module attributes {stable_mosaic.version = 11 : i64} {
  func.func @_colornorm_kernel(%arg0: i32, %arg1: memref<8x256xf32, #tpu.memory_space<vmem>>, %arg2: memref<8x1xf32, #tpu.memory_space<vmem>>, %arg3: memref<8x1xf32, #tpu.memory_space<vmem>>, %arg4: memref<8x256xf32, #tpu.memory_space<vmem>>) attributes {dimension_semantics = [#tpu.dimension_semantics<parallel>], iteration_bounds = array<i64: 1>, scalar_prefetch = 0 : i64, scratch_operands = 0 : i64, tpu.core_type = #tpu.core_type<tc>, window_params = [{transform_indices = @transform_0, window_bounds = array<i64: 8, 256>}, {transform_indices = @transform_1, window_bounds = array<i64: 8, 1>}, {transform_indices = @transform_2, window_bounds = array<i64: 8, 1>}, {transform_indices = @transform_3, window_bounds = array<i64: 8, 256>}]} {
    %c0 = arith.constant 0 : index
    %c0_0 = arith.constant 0 : index
    %0 = vector.load %arg1[%c0, %c0_0] : memref<8x256xf32, #tpu.memory_space<vmem>>, vector<8x256xf32>
    %cst = arith.constant dense<0.000000e+00> : vector<8xf32>
    %1 = vector.multi_reduction <add>, %0, %cst [1] : vector<8x256xf32> to vector<8xf32>
    %2 = vector.shape_cast %1 : vector<8xf32> to vector<8x1xf32>
    %3 = arith.mulf %0, %0 : vector<8x256xf32>
    %cst_1 = arith.constant dense<0.000000e+00> : vector<8xf32>
    %4 = vector.multi_reduction <add>, %3, %cst_1 [1] : vector<8x256xf32> to vector<8xf32>
    %5 = vector.shape_cast %4 : vector<8xf32> to vector<8x1xf32>
    %cst_2 = arith.constant 3.906250e-03 : f32
    %6 = vector.broadcast %cst_2 : f32 to vector<8x1xf32>
    %7 = arith.mulf %2, %6 : vector<8x1xf32>
    %8 = arith.mulf %7, %2 : vector<8x1xf32>
    %9 = arith.subf %5, %8 : vector<8x1xf32>
    %cst_3 = arith.constant 0.000000e+00 : f32
    %10 = vector.broadcast %cst_3 : f32 to vector<8x1xf32>
    %11 = arith.maximumf %9, %10 : vector<8x1xf32>
    %cst_4 = arith.constant 0.00392156886 : f32
    %12 = vector.broadcast %cst_4 : f32 to vector<8x1xf32>
    %13 = arith.mulf %11, %12 : vector<8x1xf32>
    %14 = math.sqrt %13 : vector<8x1xf32>
    %c0_5 = arith.constant 0 : index
    %c0_6 = arith.constant 0 : index
    %15 = vector.load %arg2[%c0_5, %c0_6] : memref<8x1xf32, #tpu.memory_space<vmem>>, vector<8x1xf32>
    %c0_7 = arith.constant 0 : index
    %c0_8 = arith.constant 0 : index
    %16 = vector.load %arg3[%c0_7, %c0_8] : memref<8x1xf32, #tpu.memory_space<vmem>>, vector<8x1xf32>
    %cst_9 = arith.constant 9.99999974E-6 : f32
    %17 = vector.broadcast %cst_9 : f32 to vector<8x1xf32>
    %18 = arith.addf %14, %17 : vector<8x1xf32>
    %19 = arith.divf %15, %18 : vector<8x1xf32>
    %20 = arith.mulf %7, %19 : vector<8x1xf32>
    %21 = arith.subf %16, %20 : vector<8x1xf32>
    %22 = vector.broadcast %19 : vector<8x1xf32> to vector<8x256xf32>
    %23 = arith.mulf %0, %22 : vector<8x256xf32>
    %24 = vector.broadcast %21 : vector<8x1xf32> to vector<8x256xf32>
    %25 = arith.addf %23, %24 : vector<8x256xf32>
    %c0_10 = arith.constant 0 : index
    %c0_11 = arith.constant 0 : index
    %26 = vector.load %arg4[%c0_10, %c0_11] : memref<8x256xf32, #tpu.memory_space<vmem>>, vector<8x256xf32>
    tpu.vector_store %arg4[%c0_10, %c0_11], %25 {strides = array<i32>} : memref<8x256xf32, #tpu.memory_space<vmem>>, vector<8x256xf32>,
    return
  }
  func.func @transform_0(%arg0: i32) -> (i32, i32) {
    %c0_i32 = arith.constant 0 : i32
    %c0_i32_0 = arith.constant 0 : i32
    return %arg0, %c0_i32 : i32, i32
  }
  func.func @transform_1(%arg0: i32) -> (i32, i32) {
    %c0_i32 = arith.constant 0 : i32
    %c0_i32_0 = arith.constant 0 : i32
    return %arg0, %c0_i32 : i32, i32
  }
  func.func @transform_2(%arg0: i32) -> (i32, i32) {
    %c0_i32 = arith.constant 0 : i32
    %c0_i32_0 = arith.constant 0 : i32
    return %arg0, %c0_i32 : i32, i32
  }
  func.func @transform_3(%arg0: i32) -> (i32, i32) {
    %c0_i32 = arith.constant 0 : i32
    %c0_i32_0 = arith.constant 0 : i32
    return %arg0, %c0_i32 : i32, i32
  }
}

</mosaic_0001>

<llo_original>
// kernel: tpu_custom_call.1
$region0: #{tpu_custom_call.1}
  #allocation0 [shape = 'u32[]', space=smem, size = 0x4, offset = 0x4, fixed_abs, tag = 'smem constant byte address 0x4 - core index']
  #allocation1 [shape = 'u32[72,128]{1,0:T(1,128)}', space=vmem, size = 0x9000, scoped, tag = 'internal scratch']
  %s0 = inlined_call_operand.vmem [shape: f32[8,256], index: 0, kind: input, shape index: {}]
  %s1 = inlined_call_operand.vmem [shape: f32[8,1], index: 1, kind: input, shape index: {}]
  %s2 = inlined_call_operand.vmem [shape: f32[8,1], index: 2, kind: input, shape index: {}]
  %s3 = inlined_call_operand.hbm [shape: f32[8,256], index: 3, kind: output, shape index: {}]
  %s4 = sld [smem:[#allocation0]]
  $region22: #{tpu_custom_call.1} parent=0
    _
  %s6 = ssub.s32 1, %s4
  %s7 = scalar_select 0, %s6, %s4
  $region1: #{tpu_custom_call.1} parent=0
    #allocation2 [shape = 'u8[8192]{0}', space=vmem, size = 0x2000, scoped, tag = 'output window, operand 0, single buffered']
    #allocation3 [shape = 's32[1]{0}', space=sflag, size = 0x4, scoped, tag = 'scoped memory for tpu_custom_call.1']
    %8 = vsyncpa [#allocation3], 0
    // Predicated region
    $region2: #{tpu_custom_call.1} parent=1 // pred_check
      _
    $region3: #{tpu_custom_call.1} parent=1 // pred_check_branch
      %10 = sbr.rel (0) target = $region5
    $region4: #{tpu_custom_call.1} parent=1 // pred_region
      _
    $region5: #{tpu_custom_call.1} parent=1 // pred_fallthru
      _
    // Predicated region
    $region6: #{tpu_custom_call.1} parent=1 // pred_check
      _
    $region7: #{tpu_custom_call.1} parent=1 // pred_check_branch
      %12 = sbr.rel (0) target = $region9
    $region8: #{tpu_custom_call.1} parent=1 // pred_region
      _
    $region9: #{tpu_custom_call.1} parent=1 // pred_fallthru
      _
    // Predicated region
    $region10: #{tpu_custom_call.1} parent=1 // pred_check
      _
    $region11: #{tpu_custom_call.1} parent=1 // pred_check_branch
      %14 = sbr.rel (0) target = $region13
    $region12: #{tpu_custom_call.1} parent=1 // pred_region
      _
    $region13: #{tpu_custom_call.1} parent=1 // pred_fallthru
      _
    %v15 = vld [vmem:[%s0] sm:$0xff]
    %v16 = vld [vmem:[%s0 + $0x8] sm:$0xff]
    %v17 = vadd.f32 %v15, %v16
    %18 = vadd.xlane.f32.xlu0 %v17
    %v19 = vpop.xlane.xlu0 %18
    %v20 = vmul.f32 %v15, %v15
    %v21 = vmul.f32 %v16, %v16
    %v22 = vadd.f32 %v20, %v21
    %23 = vadd.xlane.f32.xlu0 %v22
    %v24 = vpop.xlane.xlu0 %23
    %v25 = vmul.f32 %v19, 0.00390625
    %v26 = vmul.f32 %v25, %v19
    %v27 = vsub.f32 %v24, %v26
    %v28 = vmax.f32 %v27, 0.0
    %v29 = vmul.f32 %v28, 0.003921569
    %v30 = vrsqrt.pop %v29
    %v31 = vmul.f32 %v30, %v29
    %v32 = vmul.f32 %v31, %v30
    %v33 = vmul.f32 0.5, %v32
    %v34 = vsub.f32 1.5, %v33
    %v35 = vmul.f32 %v30, %v34
    %v36 = vmul.f32 %v29, %v35
    %vm37 = vcmp.eq.f32.partialorder %v29, inf
    %v38 = vsel %vm37, %v29, %v36
    %vm39 = vcmp.eq.f32.partialorder %v29, 0.0
    %v40 = vand.u32 %v29, 2147483648
    %v41 = vsel %vm39, %v40, %v38
    %v42 = vld [vmem:[%s1] sm:$0xff]
    %v43 = vld [vmem:[%s2] sm:$0xff]
    %v44 = vadd.f32 %v41, 1e-05
    %v45 = vrcp.pop %v44
    %v46 = vmul.f32 %v44, %v45
    %v47 = vsub.f32 1.0, %v46
    %v48 = vmul.f32 %v45, %v47
    %v49 = vadd.f32 %v45, %v48
    %vm50 = vweird.f32 %v44
    %vm51 = vweird.f32 %v45
    %vm52 = vmor %vm50, %vm51
    %v53 = vsel %vm52, %v45, %v49
    %v54 = vand.u32 2147483647, %v44
    %vm55 = vcmp.eq.f32.partialorder %v54, 8.507059e+37
    %v56 = vand.u32 %v44, 2147483648
    %v57 = vor.u32 1.1754944e-38, %v56
    %v58 = vsel %vm55, %v57, %v53
    %v59 = vmul.f32 %v42, %v58
    %v60 = vmul.f32 %v25, %v59
    %v61 = vsub.f32 %v43, %v60
    %63 = vset.pattern.permute.xlu0 0
    %64 = vperm.xlu0 %63, %v59
    %v65 = vpop.permute.xlu0 %64
    %v67 = vmul.f32 %v15, %v65
    %v68 = vmul.f32 %v16, %v65
    %70 = vset.pattern.permute.xlu0 0
    %71 = vperm.xlu0 %70, %v61
    %v72 = vpop.permute.xlu0 %71
    %v74 = vadd.f32 %v67, %v72
    %v75 = vadd.f32 %v68, %v72
    %76 = vst [vmem:[#allocation2] sm:$0xff] %v74
    %77 = vst [vmem:[#allocation2 + $0x8] sm:$0xff] %v75
    // Predicated region
    $region14: #{tpu_custom_call.1} parent=1 // pred_check
      _
    $region15: #{tpu_custom_call.1} parent=1 // pred_check_branch
      %79 = sbr.rel (0) target = $region17
    $region16: #{tpu_custom_call.1} parent=1 // pred_region
      %81 = vsyncadd [#allocation3], 0
      %s83 = sshll.u32 [#allocation2], 4
      %s84 = int_to_ptr.vmem [resolvable:$true] %s83
      %s85 = sshll.u32 %s3, 4
      %s86 = int_to_ptr.hbm [resolvable:$true] %s85
      %88 = dma.vmem_to_hbm [thread:$0]  %s84, 256, %s86, [#allocation3]
    $region17: #{tpu_custom_call.1} parent=1 // pred_fallthru
      _
    // Predicated region
    $region18: #{tpu_custom_call.1} parent=1 // pred_check
      _
    $region19: #{tpu_custom_call.1} parent=1 // pred_check_branch
      %90 = sbr.rel (0) target = $region21
    $region20: #{tpu_custom_call.1} parent=1 // pred_region
      %92 = dma.done [#allocation3], 256
    $region21: #{tpu_custom_call.1} parent=1 // pred_fallthru
      _
    %93 = vsyncpa [#allocation3], 1

</llo_original>
